<compile_context>
chip_gen: v7x
topology: tpu7x:2x2x1
jax: 0.10.0
libtpu: 0.0.40
codegen_flags: <defaults>
</compile_context>

<pallas_src>
import functools
import math

import jax
import jax.numpy as jnp
from jax import lax
from jax.experimental import pallas as pl
from jax.experimental.pallas import tpu as pltpu

F32 = jnp.float32
BF16 = jnp.bfloat16
VMEM_LIMIT = 48 * 1024 * 1024     # <64 MiB physical on v7x, plenty of headroom on v5e/v6e
MAX_TILE = 128                    # row-tile for node/edge kernels


# ----------------------------------------------------------------------------
# small helpers
# ----------------------------------------------------------------------------
def _round_up(x, m):
    return ((x + m - 1) // m) * m


def _tiles(n, max_tile=MAX_TILE):
    """Pick an (row-tile, padded-row-count) pair; padded rows are a tile multiple."""
    t = min(max_tile, _round_up(max(n, 1), 8))
    return t, _round_up(max(n, 1), t)


def _silu(x):
    return x * jax.nn.sigmoid(x)


def _ln(x, g, b, eps=1e-5):
    mu = jnp.mean(x, axis=-1, keepdims=True)
    xc = x - mu
    var = jnp.mean(xc * xc, axis=-1, keepdims=True)
    return xc * lax.rsqrt(var + eps) * g + b


def _dotbf(x, w):
    # bf16 operands (halves weight/activation traffic, full-rate MXU), f32 accumulate
    return jnp.dot(x.astype(BF16), w.astype(BF16), preferred_element_type=F32)


def _dotf(x, w):
    return jnp.dot(x, w, preferred_element_type=F32)


# ----------------------------------------------------------------------------
# pallas_call plumbing
# ----------------------------------------------------------------------------
def _row_call(kernel, out_feat, tile, row_inputs, params):
    """Row-tiled call: row_inputs tiled over rows, params as full VMEM blocks."""
    rows = row_inputs[0].shape[0]
    grid = (rows // tile,)
    in_specs = [pl.BlockSpec((tile, a.shape[1]), lambda i: (i, 0)) for a in row_inputs]
    in_specs += [pl.BlockSpec(a.shape, lambda i, _nd=a.ndim: (0,) * _nd) for a in params]
    return pl.pallas_call(
        kernel,
        out_shape=jax.ShapeDtypeStruct((rows, out_feat), F32),
        grid=grid,
        in_specs=in_specs,
        out_specs=pl.BlockSpec((tile, out_feat), lambda i: (i, 0)),
        compiler_params=pltpu.CompilerParams(
            dimension_semantics=("parallel",), vmem_limit_bytes=VMEM_LIMIT),
    )(*row_inputs, *params)


def _block_call(kernel, out_shape, *arrays):
    """Single full-array block call (per-graph statistics need the whole slab)."""
    in_specs = [pl.BlockSpec(a.shape, lambda i, _nd=a.ndim: (0,) * _nd) for a in arrays]
    return pl.pallas_call(
        kernel,
        out_shape=out_shape,
        grid=(1,),
        in_specs=in_specs,
        out_specs=pl.BlockSpec(out_shape.shape, lambda i, _nd=len(out_shape.shape): (0,) * _nd),
        compiler_params=pltpu.CompilerParams(
            dimension_semantics=("arbitrary",), vmem_limit_bytes=VMEM_LIMIT),
    )(*arrays)


# ----------------------------------------------------------------------------
# kernels
# ----------------------------------------------------------------------------
def _linear_kernel(x_ref, w_ref, b_ref, o_ref, *, act):
    y = _dotbf(x_ref[...], w_ref[...]) + b_ref[...]
    if act == "silu":
        y = _silu(y)
    elif act == "sigmoid":
        y = jax.nn.sigmoid(y)
    o_ref[...] = y


def pallas_linear(x, w, b, tile, act="none"):
    return _row_call(functools.partial(_linear_kernel, act=act),
                     w.shape[1], tile, [x], [w, b.reshape(1, -1)])


def _atom_encoder_kernel(emb_ref, meg_ref,
                         wm_ref, bm_ref, wg_ref, bg_ref,
                         w1_ref, b1_ref, lng_ref, lnb_ref, w2_ref, b2_ref,
                         o_ref):
    # full AtomEncoder chain fused: megnet proj, gate, mix, Linear+SiLU, LN, Linear
    emb = emb_ref[...]
    megp = _dotbf(meg_ref[...], wm_ref[...]) + bm_ref[...]
    combined = jnp.concatenate([emb, megp], axis=-1)
    gate = jax.nn.sigmoid(_dotbf(combined, wg_ref[...]) + bg_ref[...])
    fused = gate * emb + (1.0 - gate) * megp
    t = _silu(_dotbf(fused, w1_ref[...]) + b1_ref[...])
    t = _ln(t, lng_ref[...], lnb_ref[...])
    o_ref[...] = _dotbf(t, w2_ref[...]) + b2_ref[...]          # Dropout: identity (eval)


def _rbf_kernel(d_ref, c_ref, w1_ref, b1_ref, w2_ref, b2_ref, o_ref, *, gamma):
    # RBFExpansion (ALIGNN-style) + Linear-SiLU-Linear, fused
    rbf = jnp.exp(-gamma * (d_ref[...] - c_ref[...]) ** 2)
    h = _silu(_dotbf(rbf, w1_ref[...]) + b1_ref[...])
    o_ref[...] = _dotbf(h, w2_ref[...]) + b2_ref[...]


def _cart_msg_kernel(xi_ref, xj_ref, e_ref, env_ref,
                     w1_ref, b1_ref, wg2_ref, bg2_ref, wa2_ref, ba2_ref,
                     o_ref, *, H):
    # CartNet message; gate1||aggr1 first-stage weights fused into one matmul
    x = jnp.concatenate([xi_ref[...], xj_ref[...], e_ref[...]], axis=-1)   # (T, 3H) in VMEM only
    h1 = _silu(_dotbf(x, w1_ref[...]) + b1_ref[...])                       # (T, 2H)
    hg = h1[:, :H]
    ha = h1[:, H:]
    gate = jax.nn.sigmoid(_dotbf(hg, wg2_ref[...]) + bg2_ref[...]) * env_ref[...]
    o_ref[...] = (_dotbf(ha, wa2_ref[...]) + ba2_ref[...]) * gate


def _mat_msg_kernel(qi_ref, ki_ref, kj_ref, vi_ref, vj_ref, eh_ref,
                    wmu_ref, bmu_ref, g1_ref, be1_ref,
                    wmsg_ref, bmsg_ref, g2_ref, be2_ref,
                    o_ref, *, heads, C):
    # Matformer edge message, per-head static loop on lane-aligned (·, C) slices;
    # outputs the head-mean (concat=False) as a lane-dense (T, C) tile.
    qi, ki, kj = qi_ref[...], ki_ref[...], kj_ref[...]
    vi, vj, eh = vi_ref[...], vj_ref[...], eh_ref[...]
    wmu, bmu = wmu_ref[...], bmu_ref[...]
    g1, be1 = g1_ref[...], be1_ref[...]
    wmsg, bmsg = wmsg_ref[...], bmsg_ref[...]
    g2, be2 = g2_ref[...], be2_ref[...]
    scale = 1.0 / math.sqrt(3 * C)          # NOTE: precedes a LayerNorm (scale-invariant); kept for fidelity
    acc = jnp.zeros((qi.shape[0], C), F32)
    for hd in range(heads):
        sl = slice(hd * C, (hd + 1) * C)
        q, k_i, k_j, e = qi[:, sl], ki[:, sl], kj[:, sl], eh[:, sl]
        v_i, v_j = vi[:, sl], vj[:, sl]
        alpha = jnp.concatenate([q * k_i, q * k_j, q * e], axis=-1) * scale
        gate = jax.nn.sigmoid(_ln(alpha, g1, be1))
        vcat = jnp.concatenate([v_i, v_j, e], axis=-1)
        m = (_dotbf(vcat, wmu) + bmu) * gate
        acc = acc + _ln(_dotbf(m, wmsg) + bmsg, g2, be2)
    o_ref[...] = acc * (1.0 / heads)


def _scatter_add_kernel(idx_ref, msg_ref, out_ref, *, tile):
    # index-driven segment-sum: dst indices live in SMEM (scalar prefetch),
    # the (N_pad, H) output block stays resident in VMEM across the edge grid.
    step = pl.program_id(0)

    @pl.when(step == 0)
    def _():
        out_ref[...] = jnp.zeros_like(out_ref)

    base = step * tile

    def body(e, carry):
        d = idx_ref[base + e]
        row = msg_ref[pl.ds(e, 1), :]
        out_ref[pl.ds(d, 1), :] = out_ref[pl.ds(d, 1), :] + row
        return carry

    lax.fori_loop(0, tile, body, 0)


def pallas_scatter_add(idx, msg, n_rows, tile):
    rows, feat = msg.shape
    gs = pltpu.PrefetchScalarGridSpec(
        num_scalar_prefetch=1,
        grid=(rows // tile,),
        in_specs=[pl.BlockSpec((tile, feat), lambda i, idx_ref: (i, 0))],
        out_specs=pl.BlockSpec((n_rows, feat), lambda i, idx_ref: (0, 0)),
    )
    return pl.pallas_call(
        functools.partial(_scatter_add_kernel, tile=tile),
        grid_spec=gs,
        out_shape=jax.ShapeDtypeStruct((n_rows, feat), F32),
        compiler_params=pltpu.CompilerParams(
            dimension_semantics=("arbitrary",), vmem_limit_bytes=VMEM_LIMIT),
    )(idx, msg)


def _epilogue_kernel(brow_ref, bcol_ref, h_ref, cart_ref, mat_ref, xr_ref,
                     bnsc_ref, bnsh_ref, wbeta_ref,
                     g1w_ref, g1b_ref, g1ms_ref,
                     f1w_ref, f1b_ref, f2w_ref, f2b_ref,
                     g2w_ref, g2b_ref, g2ms_ref,
                     o_ref, *, B_pad, has_cart, has_mat):
    # fused per-layer epilogue over the full node slab:
    #   CartNet BN(eval)+SiLU+residual, Matformer skip/beta blend, branch sum,
    #   GraphNorm, residual, FFN, GraphNorm, residual.
    h = h_ref[...]
    n = h.shape[0]

    # per-graph one-hot built in-kernel from the batch-index vector (no HBM one-hot)
    oh = (brow_ref[...] == lax.broadcasted_iota(jnp.int32, (B_pad, n), 0)).astype(F32)
    oht = (bcol_ref[...] == lax.broadcasted_iota(jnp.int32, (n, B_pad), 1)).astype(F32)
    counts = jnp.maximum(jnp.sum(oh, axis=1, keepdims=True), 1.0)

    def graphnorm(x, w, b, ms):
        mean = _dotf(oh, x) / counts                     # (B_pad, H)
        out = x - _dotf(oht, mean) * ms
        var = _dotf(oh, out * out) / counts
        return w * out * lax.rsqrt(_dotf(oht, var) + 1e-5) + b

    h_comb = None
    if has_cart:
        h_comb = _silu(cart_ref[...] * bnsc_ref[...] + bnsh_ref[...]) + h
    if has_mat:
        out = mat_ref[...]
        x_r = xr_ref[...]
        beta_in = jnp.concatenate([out, x_r, out - x_r], axis=-1)
        beta = jax.nn.sigmoid(_dotf(beta_in, wbeta_ref[...]))         # (n, 1)
        h_global = beta * x_r + (1.0 - beta) * out
        h_comb = h_global if h_comb is None else h_comb + h_global

    h_attn = h + graphnorm(h_comb, g1w_ref[...], g1b_ref[...], g1ms_ref[...])
    ffn = _dotbf(_silu(_dotbf(h_attn, f1w_ref[...]) + f1b_ref[...]), f2w_ref[...]) + f2b_ref[...]
    o_ref[...] = h_attn + graphnorm(ffn, g2w_ref[...], g2b_ref[...], g2ms_ref[...])


def _set2set_kernel(brow_ref, h_ref, wih_ref, whh_ref, b_ref, o_ref, *, B_pad, H, steps):
    # Set2Set readout with the LSTM cell + masked attention fused, 3 steps in VMEM.
    x = h_ref[...]
    n = x.shape[0]
    oh = (brow_ref[...] == lax.broadcasted_iota(jnp.int32, (B_pad, n), 0)).astype(F32)

    q_star = jnp.zeros((B_pad, 2 * H), F32)
    hc = jnp.zeros((B_pad, H), F32)
    cc = jnp.zeros((B_pad, H), F32)
    for _ in range(steps):
        gates = _dotf(q_star, wih_ref[...]) + _dotf(hc, whh_ref[...]) + b_ref[...]
        i_g = jax.nn.sigmoid(gates[:, 0 * H:1 * H])
        f_g = jax.nn.sigmoid(gates[:, 1 * H:2 * H])
        g_g = jnp.tanh(gates[:, 2 * H:3 * H])
        o_g = jax.nn.sigmoid(gates[:, 3 * H:4 * H])
        cc = f_g * cc + i_g * g_g
        hc = o_g * jnp.tanh(cc)
        s = lax.dot_general(hc, x, (((1,), (1,)), ((), ())),
                            preferred_element_type=F32)               # (B_pad, n)
        s = jnp.where(oh > 0, s, -1e30)
        m = jnp.max(s, axis=-1, keepdims=True)
        ex = jnp.exp(s - m) * oh
        a = ex / jnp.maximum(jnp.sum(ex, axis=-1, keepdims=True), 1e-12)
        r = _dotf(a, x)
        q_star = jnp.concatenate([hc, r], axis=-1)
    o_ref[...] = q_star


def _fc_head_kernel(x_ref, w1_ref, b1_ref, w2_ref, b2_ref, o_ref):
    t = _silu(_dotbf(x_ref[...], w1_ref[...]) + b1_ref[...])
    o_ref[...] = _dotbf(t, w2_ref[...]) + b2_ref[...]                  # Dropout: identity (eval)


# ----------------------------------------------------------------------------
# deterministic parameter initialization (matches module __init__ shapes)
# ----------------------------------------------------------------------------
def _kaiming_uniform(key, fan_in, fan_out):
    bound = math.sqrt(6.0 / fan_in)      # kaiming_uniform_(nonlinearity='relu')
    return jax.random.uniform(key, (fan_in, fan_out), F32, -bound, bound)


def init_params(key, cfg):
    H = cfg["hidden_dim"]
    bins = cfg["edge_features"]
    heads = cfg["num_heads"]
    C = H                                # MatformerConv out_channels == hidden_dim
    keys = iter(jax.random.split(key, 512))

    def lin(fi, fo):
        return {"w": _kaiming_uniform(next(keys), fi, fo).astype(BF16),
                "b": jnp.zeros((fo,), F32)}          # _init_weights zeros biases

    p = {}
    # AtomEncoder
    p["atom_emb"] = jax.random.normal(next(keys), (119, H), F32)
    p["megnet_proj"] = lin(16, H)
    p["gate_layer"] = lin(2 * H, H)
    p["out_proj1"] = lin(H, H)
    p["out_proj_ln"] = {"g": jnp.ones((H,), F32), "b": jnp.zeros((H,), F32)}
    p["out_proj2"] = lin(H, H)
    # RBF branch
    p["rbf_centers"] = jnp.linspace(0.0, cfg["radius"], bins).astype(F32)
    p["rbf_gamma"] = float((bins - 1) / cfg["radius"])
    p["rbf_lin1"] = lin(bins, H)
    p["rbf_lin2"] = lin(H, H)
    # CartNet layers (gate1 || aggr1 fused along output dim)
    p["cart"] = []
    for _ in range(cfg["num_cart_layers"]):
        g1 = _kaiming_uniform(next(keys), 3 * H, H)
        a1 = _kaiming_uniform(next(keys), 3 * H, H)
        p["cart"].append({
            "w1": jnp.concatenate([g1, a1], axis=1).astype(BF16),
            "b1": jnp.zeros((2 * H,), F32),
            "gate2": lin(H, H), "aggr2": lin(H, H),
            "bn_w": jnp.ones((H,), F32), "bn_b": jnp.zeros((H,), F32),
            "bn_mean": jnp.zeros((H,), F32), "bn_var": jnp.ones((H,), F32),
        })
    # Matformer layers (q || k || v || skip fused projection)
    p["mat"] = []
    for _ in range(cfg["num_mat_layers"]):
        wq = _kaiming_uniform(next(keys), H, heads * C)
        wk = _kaiming_uniform(next(keys), H, heads * C)
        wv = _kaiming_uniform(next(keys), H, heads * C)
        ws = _kaiming_uniform(next(keys), H, C)
        p["mat"].append({
            "qkvs_w": jnp.concatenate([wq, wk, wv, ws], axis=1).astype(BF16),
            "qkvs_b": jnp.zeros((3 * heads * C + C,), F32),
            "edge_w": _kaiming_uniform(next(keys), H, heads * C).astype(BF16),  # lin_edge, bias=False
            "msg_update": lin(3 * C, 3 * C),
            "ln_alpha": {"g": jnp.ones((3 * C,), F32), "b": jnp.zeros((3 * C,), F32)},
            "msg_layer": lin(3 * C, C),
            "ln_msg": {"g": jnp.ones((C,), F32), "b": jnp.zeros((C,), F32)},
            "beta_w": _kaiming_uniform(next(keys), 3 * C, 1),                   # lin_beta, bias=False
        })
    nl = max(cfg["num_cart_layers"], cfg["num_mat_layers"])
    p["norm_attn"] = [{"w": jnp.ones((H,), F32), "b": jnp.zeros((H,), F32),
                       "ms": jnp.ones((H,), F32)} for _ in range(nl)]
    p["ffn"] = [{"l1": lin(H, 2 * H), "l2": lin(2 * H, H)} for _ in range(nl)]
    p["norm_ffn"] = [{"w": jnp.ones((H,), F32), "b": jnp.zeros((H,), F32),
                      "ms": jnp.ones((H,), F32)} for _ in range(nl)]
    # Set2Set LSTM (input 2H, hidden H); kept f32 (small, recurrence precision)
    lb = 1.0 / math.sqrt(H)
    p["lstm"] = {
        "wih": jax.random.uniform(next(keys), (2 * H, 4 * H), F32, -lb, lb),
        "whh": jax.random.uniform(next(keys), (H, 4 * H), F32, -lb, lb),
        "b": (jax.random.uniform(next(keys), (4 * H,), F32, -lb, lb)
              + jax.random.uniform(next(keys), (4 * H,), F32, -lb, lb)),
    }
    p["fc1"] = lin(2 * H, cfg["fc_features"])
    p["fc2"] = lin(cfg["fc_features"], cfg["output_features"])
    return p


# ----------------------------------------------------------------------------
# forward pass
# ----------------------------------------------------------------------------
def unicrystalformer_forward(p, data, cfg):
    H = cfg["hidden_dim"]
    heads = cfg["num_heads"]
    C = H
    HC = heads * C
    radius = cfg["radius"]
    B = cfg["num_graphs"]
    nl = max(cfg["num_cart_layers"], cfg["num_mat_layers"])

    x_atom = data["x"]
    megnet = data["atom_megnet_embed"]
    edge_vec = data["edge_attr"]
    edge_index = data["edge_index"]
    batch = data["batch"]
    cart_dist = data["cart_dist"]
    N = int(x_atom.shape[0])
    E = int(edge_vec.shape[0])

    # ---- padding: rows to tile multiples, with >=1 dummy node row so that
    #      padded-edge scatter contributions land on a never-read node row. ----
    node_tile, N_pad = _tiles(N + 1)
    edge_tile, E_pad = _tiles(E)
    B_pad = _round_up(B + 1, 8)
    pn, pe = N_pad - N, E_pad - E

    batch_pad = jnp.concatenate([batch.astype(jnp.int32), jnp.full((pn,), B, jnp.int32)])
    batch_row = batch_pad.reshape(1, N_pad)
    batch_col = batch_pad.reshape(N_pad, 1)
    x_atom_p = jnp.pad(x_atom, (0, pn))
    megnet_p = jnp.pad(megnet, ((0, pn), (0, 0)))
    src = jnp.pad(edge_index[0].astype(jnp.int32), (0, pe))
    dst = jnp.pad(edge_index[1].astype(jnp.int32), (0, pe), constant_values=N)   # pad -> dummy node
    edge_vec_p = jnp.pad(edge_vec, ((0, pe), (0, 0)))
    cart_dist_p = jnp.pad(cart_dist, (0, pe))
    edge_valid = (jnp.arange(E_pad) < E).astype(F32)

    # ---------------- AtomEncoder (single fused kernel, node-tiled) ----------------
    emb = jnp.take(p["atom_emb"], x_atom_p, axis=0)                   # embedding gather (glue)
    h = _row_call(
        _atom_encoder_kernel, H, node_tile,
        [emb, megnet_p],
        [p["megnet_proj"]["w"], p["megnet_proj"]["b"].reshape(1, -1),
         p["gate_layer"]["w"], p["gate_layer"]["b"].reshape(1, -1),
         p["out_proj1"]["w"], p["out_proj1"]["b"].reshape(1, -1),
         p["out_proj_ln"]["g"].reshape(1, -1), p["out_proj_ln"]["b"].reshape(1, -1),
         p["out_proj2"]["w"], p["out_proj2"]["b"].reshape(1, -1)])

    # ---------------- RBF edge embedding (edge-tiled, fused) ----------------
    edge_dist = jnp.sqrt(jnp.sum(edge_vec_p * edge_vec_p, axis=1, keepdims=True))   # (E_pad, 1)
    edge_attr = _row_call(
        functools.partial(_rbf_kernel, gamma=p["rbf_gamma"]), H, edge_tile,
        [edge_dist],
        [p["rbf_centers"].reshape(1, -1),
         p["rbf_lin1"]["w"], p["rbf_lin1"]["b"].reshape(1, -1),
         p["rbf_lin2"]["w"], p["rbf_lin2"]["b"].reshape(1, -1)])

    # TODO(synk): exact CartNet envelope form unavailable; cosine cutoff used.
    env = 0.5 * (jnp.cos(jnp.pi * cart_dist_p / radius) + 1.0)
    env = (env * (cart_dist_p <= radius).astype(F32) * edge_valid).reshape(E_pad, 1)

    zeros_NH = None
    for i in range(nl):
        has_cart = i < cfg["num_cart_layers"]
        has_mat = i < cfg["num_mat_layers"]

        # -------- CartNet_layer (local branch) --------
        if has_cart:
            cp = p["cart"][i]
            x_i = jnp.take(h, dst, axis=0)                            # gathers: XLA glue
            x_j = jnp.take(h, src, axis=0)
            msg = _row_call(
                functools.partial(_cart_msg_kernel, H=H), H, edge_tile,
                [x_i, x_j, edge_attr, env],
                [cp["w1"], cp["b1"].reshape(1, -1),
                 cp["gate2"]["w"], cp["gate2"]["b"].reshape(1, -1),
                 cp["aggr2"]["w"], cp["aggr2"]["b"].reshape(1, -1)])
            cart_aggr = pallas_scatter_add(dst, msg, N_pad, edge_tile)
            bn_scale = cp["bn_w"] / jnp.sqrt(cp["bn_var"] + 1e-5)     # BatchNorm1d (eval) folded
            bn_shift = cp["bn_b"] - cp["bn_mean"] * bn_scale
        else:
            if zeros_NH is None:
                zeros_NH = jnp.zeros((N_pad, H), F32)
            cart_aggr, bn_scale, bn_shift = zeros_NH, jnp.ones((H,), F32), jnp.zeros((H,), F32)

        # -------- MatformerConv (global branch) --------
        if has_mat:
            mp = p["mat"][i]
            proj = pallas_linear(h, mp["qkvs_w"], mp["qkvs_b"], node_tile)   # (N_pad, 3*HC + C)
            q = proj[:, 0 * HC:1 * HC]
            k = proj[:, 1 * HC:2 * HC]
            v = proj[:, 2 * HC:3 * HC]
            x_r = proj[:, 3 * HC:]
            e_h = pallas_linear(edge_attr, mp["edge_w"], jnp.zeros((HC,), F32), edge_tile)
            q_i = jnp.take(q, dst, axis=0)
            k_i = jnp.take(k, dst, axis=0)
            k_j = jnp.take(k, src, axis=0)
            v_i = jnp.take(v, dst, axis=0)
            v_j = jnp.take(v, src, axis=0)
            msg = _row_call(
                functools.partial(_mat_msg_kernel, heads=heads, C=C), C, edge_tile,
                [q_i, k_i, k_j, v_i, v_j, e_h],
                [mp["msg_update"]["w"], mp["msg_update"]["b"].reshape(1, -1),
                 mp["ln_alpha"]["g"].reshape(1, -1), mp["ln_alpha"]["b"].reshape(1, -1),
                 mp["msg_layer"]["w"], mp["msg_layer"]["b"].reshape(1, -1),
                 mp["ln_msg"]["g"].reshape(1, -1), mp["ln_msg"]["b"].reshape(1, -1)])
            mat_out = pallas_scatter_add(dst, msg, N_pad, edge_tile)
            beta_w = mp["beta_w"]
        else:
            if zeros_NH is None:
                zeros_NH = jnp.zeros((N_pad, H), F32)
            mat_out, x_r, beta_w = zeros_NH, zeros_NH, jnp.zeros((3 * C, 1), F32)

        # -------- fused epilogue: branch merge + GraphNorm + FFN + GraphNorm --------
        na, nf, fp = p["norm_attn"][i], p["norm_ffn"][i], p["ffn"][i]
        h = _block_call(
            functools.partial(_epilogue_kernel, B_pad=B_pad,
                              has_cart=has_cart, has_mat=has_mat),
            jax.ShapeDtypeStruct((N_pad, H), F32),
            batch_row, batch_col, h, cart_aggr, mat_out, x_r,
            bn_scale.reshape(1, -1), bn_shift.reshape(1, -1), beta_w,
            na["w"].reshape(1, -1), na["b"].reshape(1, -1), na["ms"].reshape(1, -1),
            fp["l1"]["w"], fp["l1"]["b"].reshape(1, -1),
            fp["l2"]["w"], fp["l2"]["b"].reshape(1, -1),
            nf["w"].reshape(1, -1), nf["b"].reshape(1, -1), nf["ms"].reshape(1, -1))

    # ---------------- Set2Set readout (3 processing steps, fully fused) ----------------
    lstm = p["lstm"]
    q_star = _block_call(
        functools.partial(_set2set_kernel, B_pad=B_pad, H=H, steps=3),
        jax.ShapeDtypeStruct((B_pad, 2 * H), F32),
        batch_row, h, lstm["wih"], lstm["whh"], lstm["b"].reshape(1, -1))

    # ---------------- output head ----------------
    out = _block_call(
        _fc_head_kernel,
        jax.ShapeDtypeStruct((B_pad, cfg["output_features"]), F32),
        q_star, p["fc1"]["w"], p["fc1"]["b"].reshape(1, -1),
        p["fc2"]["w"], p["fc2"]["b"].reshape(1, -1))
    return out[:B]


# ----------------------------------------------------------------------------
# demo
# ----------------------------------------------------------------------------
if __name__ == "__main__":
    cfg = dict(num_cart_layers=2, num_mat_layers=2, edge_features=128, hidden_dim=128,
               fc_features=128, output_features=1, num_heads=4, radius=8.0)

    key = jax.random.PRNGKey(0)
    kp, ka, km, ke = jax.random.split(key, 4)
    params = init_params(kp, cfg)

    # small synthetic crystal batch: 2 graphs x 6 atoms, ring connectivity
    n_per, B = 6, 2
    N = n_per * B
    cfg["num_graphs"] = B
    batch = jnp.repeat(jnp.arange(B, dtype=jnp.int32), n_per)
    atomic_numbers = jax.random.randint(ka, (N,), 1, 119, dtype=jnp.int32)
    megnet_embed = jax.random.normal(km, (N, 16), F32)

    src_l, dst_l = [], []
    for g in range(B):
        off = g * n_per
        for a in range(n_per):
            b_ = (a + 1) % n_per
            src_l += [off + a, off + b_]
            dst_l += [off + b_, off + a]
    edge_index = jnp.array([src_l, dst_l], dtype=jnp.int32)
    E = edge_index.shape[1]
    edge_vec = jax.random.normal(ke, (E, 3), F32) * 2.0
    cart_dist = jnp.sqrt(jnp.sum(edge_vec * edge_vec, axis=1))

    data = dict(x=atomic_numbers, atom_megnet_embed=megnet_embed,
                edge_attr=edge_vec, edge_index=edge_index,
                batch=batch, cart_dist=cart_dist)

    out = unicrystalformer_forward(params, data, cfg)
    out = jax.block_until_ready(out)
    assert out.shape == (B, cfg["output_features"])
    assert bool(jnp.all(jnp.isfinite(out)))
    print("KERNEL_OK")
</pallas_src>

<mosaic_0001>
module attributes {stable_mosaic.version = 11 : i64} {
  func.func @_atom_encoder_kernel(%arg0: i32, %arg1: memref<16x128xf32, #tpu.memory_space<vmem>>, %arg2: memref<16x16xf32, #tpu.memory_space<vmem>>, %arg3: memref<16x128xbf16, #tpu.memory_space<vmem>>, %arg4: memref<1x128xf32, #tpu.memory_space<vmem>>, %arg5: memref<256x128xbf16, #tpu.memory_space<vmem>>, %arg6: memref<1x128xf32, #tpu.memory_space<vmem>>, %arg7: memref<128x128xbf16, #tpu.memory_space<vmem>>, %arg8: memref<1x128xf32, #tpu.memory_space<vmem>>, %arg9: memref<1x128xf32, #tpu.memory_space<vmem>>, %arg10: memref<1x128xf32, #tpu.memory_space<vmem>>, %arg11: memref<128x128xbf16, #tpu.memory_space<vmem>>, %arg12: memref<1x128xf32, #tpu.memory_space<vmem>>, %arg13: memref<16x128xf32, #tpu.memory_space<vmem>>) attributes {dimension_semantics = [#tpu.dimension_semantics<parallel>], iteration_bounds = array<i64: 1>, scalar_prefetch = 0 : i64, scratch_operands = 0 : i64, tpu.core_type = #tpu.core_type<tc>, window_params = [{transform_indices = @transform_0, window_bounds = array<i64: 16, 128>}, {transform_indices = @transform_1, window_bounds = array<i64: 16, 16>}, {pipeline_mode = #tpu.pipeline_mode<synchronous>, transform_indices = @transform_2, window_bounds = array<i64: 16, 128>}, {pipeline_mode = #tpu.pipeline_mode<synchronous>, transform_indices = @transform_3, window_bounds = array<i64: 1, 128>}, {pipeline_mode = #tpu.pipeline_mode<synchronous>, transform_indices = @transform_4, window_bounds = array<i64: 256, 128>}, {pipeline_mode = #tpu.pipeline_mode<synchronous>, transform_indices = @transform_5, window_bounds = array<i64: 1, 128>}, {pipeline_mode = #tpu.pipeline_mode<synchronous>, transform_indices = @transform_6, window_bounds = array<i64: 128, 128>}, {pipeline_mode = #tpu.pipeline_mode<synchronous>, transform_indices = @transform_7, window_bounds = array<i64: 1, 128>}, {pipeline_mode = #tpu.pipeline_mode<synchronous>, transform_indices = @transform_8, window_bounds = array<i64: 1, 128>}, {pipeline_mode = #tpu.pipeline_mode<synchronous>, transform_indices = @transform_9, window_bounds = array<i64: 1, 128>}, {pipeline_mode = #tpu.pipeline_mode<synchronous>, transform_indices = @transform_10, window_bounds = array<i64: 128, 128>}, {pipeline_mode = #tpu.pipeline_mode<synchronous>, transform_indices = @transform_11, window_bounds = array<i64: 1, 128>}, {transform_indices = @transform_12, window_bounds = array<i64: 16, 128>}]} {
    %c0 = arith.constant 0 : index
    %c0_0 = arith.constant 0 : index
    %0 = vector.load %arg1[%c0, %c0_0] : memref<16x128xf32, #tpu.memory_space<vmem>>, vector<16x128xf32>
    %c0_1 = arith.constant 0 : index
    %c0_2 = arith.constant 0 : index
    %1 = vector.load %arg2[%c0_1, %c0_2] : memref<16x16xf32, #tpu.memory_space<vmem>>, vector<16x16xf32>
    %c0_3 = arith.constant 0 : index
    %c0_4 = arith.constant 0 : index
    %2 = vector.load %arg3[%c0_3, %c0_4] : memref<16x128xbf16, #tpu.memory_space<vmem>>, vector<16x128xbf16>
    %3 = arith.truncf %1 : vector<16x16xf32> to vector<16x16xbf16>
    %cst = arith.constant dense<0.000000e+00> : vector<16x128xf32>
    %4 = tpu.matmul %3, %2, %cst {dimension_numbers = #tpu.dot_dimension_numbers<[1], [0], [0], [1], [0, 0, 1, 1], [], []>} : vector<16x16xbf16>, vector<16x128xbf16>, vector<16x128xf32> -> vector<16x128xf32>
    %c0_5 = arith.constant 0 : index
    %c0_6 = arith.constant 0 : index
    %5 = vector.load %arg4[%c0_5, %c0_6] : memref<1x128xf32, #tpu.memory_space<vmem>>, vector<1x128xf32>
    %6 = vector.broadcast %5 : vector<1x128xf32> to vector<16x128xf32>
    %7 = arith.addf %4, %6 : vector<16x128xf32>
    %8 = tpu.concatenate %0, %7 in 1 : vector<16x128xf32>, vector<16x128xf32> -> vector<16x256xf32>
    %c0_7 = arith.constant 0 : index
    %c0_8 = arith.constant 0 : index
    %9 = vector.load %arg5[%c0_7, %c0_8] : memref<256x128xbf16, #tpu.memory_space<vmem>>, vector<256x128xbf16>
    %10 = arith.truncf %8 : vector<16x256xf32> to vector<16x256xbf16>
    %cst_9 = arith.constant dense<0.000000e+00> : vector<16x128xf32>
    %11 = tpu.matmul %10, %9, %cst_9 {dimension_numbers = #tpu.dot_dimension_numbers<[1], [0], [0], [1], [0, 0, 1, 1], [], []>} : vector<16x256xbf16>, vector<256x128xbf16>, vector<16x128xf32> -> vector<16x128xf32>
    %c0_10 = arith.constant 0 : index
    %c0_11 = arith.constant 0 : index
    %12 = vector.load %arg6[%c0_10, %c0_11] : memref<1x128xf32, #tpu.memory_space<vmem>>, vector<1x128xf32>
    %13 = vector.broadcast %12 : vector<1x128xf32> to vector<16x128xf32>
    %14 = arith.addf %11, %13 : vector<16x128xf32>
    %15 = arith.negf %14 : vector<16x128xf32>
    %16 = math.exp %15 : vector<16x128xf32>
    %cst_12 = arith.constant 1.000000e+00 : f32
    %17 = vector.broadcast %cst_12 : f32 to vector<16x128xf32>
    %18 = arith.addf %17, %16 : vector<16x128xf32>
    %19 = arith.divf %17, %18 : vector<16x128xf32>
    %20 = arith.mulf %19, %0 : vector<16x128xf32>
    %cst_13 = arith.constant 1.000000e+00 : f32
    %21 = vector.broadcast %cst_13 : f32 to vector<16x128xf32>
    %22 = arith.subf %21, %19 : vector<16x128xf32>
    %23 = arith.mulf %22, %7 : vector<16x128xf32>
    %24 = arith.addf %20, %23 : vector<16x128xf32>
    %c0_14 = arith.constant 0 : index
    %c0_15 = arith.constant 0 : index
    %25 = vector.load %arg7[%c0_14, %c0_15] : memref<128x128xbf16, #tpu.memory_space<vmem>>, vector<128x128xbf16>
    %26 = arith.truncf %24 : vector<16x128xf32> to vector<16x128xbf16>
    %cst_16 = arith.constant dense<0.000000e+00> : vector<16x128xf32>
    %27 = tpu.matmul %26, %25, %cst_16 {dimension_numbers = #tpu.dot_dimension_numbers<[1], [0], [0], [1], [0, 0, 1, 1], [], []>} : vector<16x128xbf16>, vector<128x128xbf16>, vector<16x128xf32> -> vector<16x128xf32>
    %c0_17 = arith.constant 0 : index
    %c0_18 = arith.constant 0 : index
    %28 = vector.load %arg8[%c0_17, %c0_18] : memref<1x128xf32, #tpu.memory_space<vmem>>, vector<1x128xf32>
    %29 = vector.broadcast %28 : vector<1x128xf32> to vector<16x128xf32>
    %30 = arith.addf %27, %29 : vector<16x128xf32>
    %31 = arith.negf %30 : vector<16x128xf32>
    %32 = math.exp %31 : vector<16x128xf32>
    %cst_19 = arith.constant 1.000000e+00 : f32
    %33 = vector.broadcast %cst_19 : f32 to vector<16x128xf32>
    %34 = arith.addf %33, %32 : vector<16x128xf32>
    %35 = arith.divf %33, %34 : vector<16x128xf32>
    %36 = arith.mulf %30, %35 : vector<16x128xf32>
    %c0_20 = arith.constant 0 : index
    %c0_21 = arith.constant 0 : index
    %37 = vector.load %arg9[%c0_20, %c0_21] : memref<1x128xf32, #tpu.memory_space<vmem>>, vector<1x128xf32>
    %c0_22 = arith.constant 0 : index
    %c0_23 = arith.constant 0 : index
    %38 = vector.load %arg10[%c0_22, %c0_23] : memref<1x128xf32, #tpu.memory_space<vmem>>, vector<1x128xf32>
    %cst_24 = arith.constant dense<0.000000e+00> : vector<16xf32>
    %39 = vector.multi_reduction <add>, %36, %cst_24 [1] : vector<16x128xf32> to vector<16xf32>
    %40 = vector.shape_cast %39 : vector<16xf32> to vector<16x1xf32>
    %cst_25 = arith.constant 1.280000e+02 : f32
    %41 = vector.broadcast %cst_25 : f32 to vector<16x1xf32>
    %42 = arith.divf %40, %41 : vector<16x1xf32>
    %43 = vector.broadcast %42 : vector<16x1xf32> to vector<16x128xf32>
    %44 = arith.subf %36, %43 : vector<16x128xf32>
    %45 = arith.mulf %44, %44 : vector<16x128xf32>
    %cst_26 = arith.constant dense<0.000000e+00> : vector<16xf32>
    %46 = vector.multi_reduction <add>, %45, %cst_26 [1] : vector<16x128xf32> to vector<16xf32>
    %47 = vector.shape_cast %46 : vector<16xf32> to vector<16x1xf32>
    %cst_27 = arith.constant 1.280000e+02 : f32
    %48 = vector.broadcast %cst_27 : f32 to vector<16x1xf32>
    %49 = arith.divf %47, %48 : vector<16x1xf32>
    %cst_28 = arith.constant 9.99999974E-6 : f32
    %50 = vector.broadcast %cst_28 : f32 to vector<16x1xf32>
    %51 = arith.addf %49, %50 : vector<16x1xf32>
    %52 = math.rsqrt %51 : vector<16x1xf32>
    %53 = vector.broadcast %52 : vector<16x1xf32> to vector<16x128xf32>
    %54 = arith.mulf %44, %53 : vector<16x128xf32>
    %55 = vector.broadcast %37 : vector<1x128xf32> to vector<16x128xf32>
    %56 = arith.mulf %54, %55 : vector<16x128xf32>
    %57 = vector.broadcast %38 : vector<1x128xf32> to vector<16x128xf32>
    %58 = arith.addf %56, %57 : vector<16x128xf32>
    %c0_29 = arith.constant 0 : index
    %c0_30 = arith.constant 0 : index
    %59 = vector.load %arg11[%c0_29, %c0_30] : memref<128x128xbf16, #tpu.memory_space<vmem>>, vector<128x128xbf16>
    %60 = arith.truncf %58 : vector<16x128xf32> to vector<16x128xbf16>
    %cst_31 = arith.constant dense<0.000000e+00> : vector<16x128xf32>
    %61 = tpu.matmul %60, %59, %cst_31 {dimension_numbers = #tpu.dot_dimension_numbers<[1], [0], [0], [1], [0, 0, 1, 1], [], []>} : vector<16x128xbf16>, vector<128x128xbf16>, vector<16x128xf32> -> vector<16x128xf32>
    %c0_32 = arith.constant 0 : index
    %c0_33 = arith.constant 0 : index
    %62 = vector.load %arg12[%c0_32, %c0_33] : memref<1x128xf32, #tpu.memory_space<vmem>>, vector<1x128xf32>
    %63 = vector.broadcast %62 : vector<1x128xf32> to vector<16x128xf32>
    %64 = arith.addf %61, %63 : vector<16x128xf32>
    %c0_34 = arith.constant 0 : index
    %c0_35 = arith.constant 0 : index
    %65 = vector.load %arg13[%c0_34, %c0_35] : memref<16x128xf32, #tpu.memory_space<vmem>>, vector<16x128xf32>
    tpu.vector_store %arg13[%c0_34, %c0_35], %64 {strides = array<i32>} : memref<16x128xf32, #tpu.memory_space<vmem>>, vector<16x128xf32>,
    return
  }
  func.func @transform_0(%arg0: i32) -> (i32, i32) {
    %c0_i32 = arith.constant 0 : i32
    %c0_i32_0 = arith.constant 0 : i32
    return %arg0, %c0_i32 : i32, i32
  }
  func.func @transform_1(%arg0: i32) -> (i32, i32) {
    %c0_i32 = arith.constant 0 : i32
    %c0_i32_0 = arith.constant 0 : i32
    return %arg0, %c0_i32 : i32, i32
  }
  func.func @transform_2(%arg0: i32) -> (i32, i32) {
    %c0_i32 = arith.constant 0 : i32
    %c0_i32_0 = arith.constant 0 : i32
    %c0_i32_1 = arith.constant 0 : i32
    return %c0_i32, %c0_i32_0 : i32, i32
  }
  func.func @transform_3(%arg0: i32) -> (i32, i32) {
    %c0_i32 = arith.constant 0 : i32
    %c0_i32_0 = arith.constant 0 : i32
    %c0_i32_1 = arith.constant 0 : i32
    return %c0_i32, %c0_i32_0 : i32, i32
  }
  func.func @transform_4(%arg0: i32) -> (i32, i32) {
    %c0_i32 = arith.constant 0 : i32
    %c0_i32_0 = arith.constant 0 : i32
    %c0_i32_1 = arith.constant 0 : i32
    return %c0_i32, %c0_i32_0 : i32, i32
  }
  func.func @transform_5(%arg0: i32) -> (i32, i32) {
    %c0_i32 = arith.constant 0 : i32
    %c0_i32_0 = arith.constant 0 : i32
    %c0_i32_1 = arith.constant 0 : i32
    return %c0_i32, %c0_i32_0 : i32, i32
  }
  func.func @transform_6(%arg0: i32) -> (i32, i32) {
    %c0_i32 = arith.constant 0 : i32
    %c0_i32_0 = arith.constant 0 : i32
    %c0_i32_1 = arith.constant 0 : i32
    return %c0_i32, %c0_i32_0 : i32, i32
  }
  func.func @transform_7(%arg0: i32) -> (i32, i32) {
    %c0_i32 = arith.constant 0 : i32
    %c0_i32_0 = arith.constant 0 : i32
    %c0_i32_1 = arith.constant 0 : i32
    return %c0_i32, %c0_i32_0 : i32, i32
  }
  func.func @transform_8(%arg0: i32) -> (i32, i32) {
    %c0_i32 = arith.constant 0 : i32
    %c0_i32_0 = arith.constant 0 : i32
    %c0_i32_1 = arith.constant 0 : i32
    return %c0_i32, %c0_i32_0 : i32, i32
  }
  func.func @transform_9(%arg0: i32) -> (i32, i32) {
    %c0_i32 = arith.constant 0 : i32
    %c0_i32_0 = arith.constant 0 : i32
    %c0_i32_1 = arith.constant 0 : i32
    return %c0_i32, %c0_i32_0 : i32, i32
  }
  func.func @transform_10(%arg0: i32) -> (i32, i32) {
    %c0_i32 = arith.constant 0 : i32
    %c0_i32_0 = arith.constant 0 : i32
    %c0_i32_1 = arith.constant 0 : i32
    return %c0_i32, %c0_i32_0 : i32, i32
  }
  func.func @transform_11(%arg0: i32) -> (i32, i32) {
    %c0_i32 = arith.constant 0 : i32
    %c0_i32_0 = arith.constant 0 : i32
    %c0_i32_1 = arith.constant 0 : i32
    return %c0_i32, %c0_i32_0 : i32, i32
  }
  func.func @transform_12(%arg0: i32) -> (i32, i32) {
    %c0_i32 = arith.constant 0 : i32
    %c0_i32_0 = arith.constant 0 : i32
    return %arg0, %c0_i32 : i32, i32
  }
}

</mosaic_0001>

<llo_original>
// kernel: tpu_custom_call.1
$region0: #{tpu_custom_call.1}
  #allocation0 [shape = 'u32[]', space=smem, size = 0x4, offset = 0x4, fixed_abs, tag = 'smem constant byte address 0x4 - core index']
  #allocation1 [shape = 'u32[144,128]{1,0:T(1,128)}', space=vmem, size = 0x12000, scoped, tag = 'internal scratch']
  %s0 = inlined_call_operand.hbm [shape: f32[16,128], index: 0, kind: input, shape index: {}]
  %s1 = inlined_call_operand.hbm [shape: f32[16,16], index: 1, kind: input, shape index: {}]
  %s2 = inlined_call_operand.hbm [shape: bf16[16,128], index: 2, kind: input, shape index: {}]
  %s3 = inlined_call_operand.vmem [shape: f32[1,128], index: 3, kind: input, shape index: {}]
  %s4 = inlined_call_operand.hbm [shape: bf16[256,128], index: 4, kind: input, shape index: {}]
  %s5 = inlined_call_operand.vmem [shape: f32[1,128], index: 5, kind: input, shape index: {}]
  %s6 = inlined_call_operand.hbm [shape: bf16[128,128], index: 6, kind: input, shape index: {}]
  %s7 = inlined_call_operand.vmem [shape: f32[1,128], index: 7, kind: input, shape index: {}]
  %s8 = inlined_call_operand.vmem [shape: f32[1,128], index: 8, kind: input, shape index: {}]
  %s9 = inlined_call_operand.vmem [shape: f32[1,128], index: 9, kind: input, shape index: {}]
  %s10 = inlined_call_operand.hbm [shape: bf16[128,128], index: 10, kind: input, shape index: {}]
  %s11 = inlined_call_operand.vmem [shape: f32[1,128], index: 11, kind: input, shape index: {}]
  %s12 = inlined_call_operand.hbm [shape: f32[16,128], index: 12, kind: output, shape index: {}]
  %s13 = sld [smem:[#allocation0]]
  $region82: #{tpu_custom_call.1} parent=0
    _
  %s15 = ssub.s32 1, %s13
  %s16 = scalar_select 0, %s15, %s13
  $region1: #{tpu_custom_call.1} parent=0
    #allocation2 [shape = 'u8[8192]{0}', space=vmem, size = 0x2000, scoped, tag = 'input window, operand 0, single buffered']
    #allocation3 [shape = 's32[1]{0}', space=sflag, size = 0x4, scoped, tag = 'scoped memory for tpu_custom_call.1']
    #allocation4 [shape = 's32[1]{0}', space=sflag, size = 0x4, scoped, tag = 'scoped memory for tpu_custom_call.1']
    #allocation5 [shape = 'u8[8192]{0}', space=vmem, size = 0x2000, scoped, tag = 'input window, operand 1, single buffered']
    #allocation6 [shape = 's32[1]{0}', space=sflag, size = 0x4, scoped, tag = 'scoped memory for tpu_custom_call.1']
    #allocation7 [shape = 'u8[4096]{0}', space=vmem, size = 0x1000, scoped, tag = 'input window, operand 2, single buffered']
    #allocation8 [shape = 'u8[65536]{0}', space=vmem, size = 0x10000, scoped, tag = 'input window, operand 4, single buffered']
    #allocation9 [shape = 's32[1]{0}', space=sflag, size = 0x4, scoped, tag = 'scoped memory for tpu_custom_call.1']
    #allocation10 [shape = 'u8[32768]{0}', space=vmem, size = 0x8000, scoped, tag = 'input window, operand 6, single buffered']
    #allocation11 [shape = 'u8[32768]{0}', space=vmem, size = 0x8000, scoped, tag = 'input window, operand 10, single buffered']
    #allocation12 [shape = 's32[1]{0}', space=sflag, size = 0x4, scoped, tag = 'scoped memory for tpu_custom_call.1']
    #allocation13 [shape = 'u8[8192]{0}', space=vmem, size = 0x2000, scoped, tag = 'output window, operand 0, single buffered']
    %17 = vsyncpa [#allocation3], 0
    %18 = vsyncpa [#allocation6], 0
    %19 = vsyncpa [#allocation9], 0
    %20 = vsyncpa [#allocation12], 0
    %21 = vsyncpa [#allocation4], 0
    // Predicated region
    $region2: #{tpu_custom_call.1} parent=1 // pred_check
      _
    $region3: #{tpu_custom_call.1} parent=1 // pred_check_branch
      %23 = sbr.rel (0) target = $region5
    $region4: #{tpu_custom_call.1} parent=1 // pred_region
      %s25 = ssub.s32 256, 256
      %26 = vsyncadd [#allocation3], %s25
      %s27 = sshll.u32 [#allocation2], 4
      %s28 = int_to_ptr.vmem [resolvable:$true] %s27
      %33 = dma.hbm_to_vmem [thread:$0]  %s0, 256, %s28, [#allocation3], 128, 128, 8
    $region5: #{tpu_custom_call.1} parent=1 // pred_fallthru
      _
    // Predicated region
    $region6: #{tpu_custom_call.1} parent=1 // pred_check
      _
    $region7: #{tpu_custom_call.1} parent=1 // pred_check_branch
      %35 = sbr.rel (0) target = $region9
    $region8: #{tpu_custom_call.1} parent=1 // pred_region
      %s37 = ssub.s32 256, 256
      %38 = vsyncadd [#allocation6], %s37
      %s39 = sshll.u32 [#allocation5], 4
      %s40 = int_to_ptr.vmem [resolvable:$true] %s39
      %45 = dma.hbm_to_vmem [thread:$0]  %s1, 256, %s40, [#allocation6], 128, 128, 8
    $region9: #{tpu_custom_call.1} parent=1 // pred_fallthru
      _
    // Predicated region
    $region10: #{tpu_custom_call.1} parent=1 // pred_check
      _
    $region11: #{tpu_custom_call.1} parent=1 // pred_check_branch
      %47 = sbr.rel (0) target = $region13
    $region12: #{tpu_custom_call.1} parent=1 // pred_region
      %s49 = ssub.s32 128, 128
      %50 = vsyncadd [#allocation6], %s49
      %s51 = sshll.u32 [#allocation7], 4
      %s52 = int_to_ptr.vmem [resolvable:$true] %s51
      %57 = dma.hbm_to_vmem [thread:$0]  %s2, 128, %s52, [#allocation6], 64, 64, 4
    $region13: #{tpu_custom_call.1} parent=1 // pred_fallthru
      _
    // Predicated region
    $region14: #{tpu_custom_call.1} parent=1 // pred_check
      _
    $region15: #{tpu_custom_call.1} parent=1 // pred_check_branch
      %59 = sbr.rel (0) target = $region17
    $region16: #{tpu_custom_call.1} parent=1 // pred_region
      _
    $region17: #{tpu_custom_call.1} parent=1 // pred_fallthru
      _
    // Predicated region
    $region18: #{tpu_custom_call.1} parent=1 // pred_check
      _
    $region19: #{tpu_custom_call.1} parent=1 // pred_check_branch
      %61 = sbr.rel (0) target = $region21
    $region20: #{tpu_custom_call.1} parent=1 // pred_region
      %s63 = ssub.s32 2048, 2048
      %64 = vsyncadd [#allocation9], %s63
      %s65 = sshll.u32 [#allocation8], 4
      %s66 = int_to_ptr.vmem [resolvable:$true] %s65
      %71 = dma.hbm_to_vmem [thread:$0]  %s4, 2048, %s66, [#allocation9], 64, 64, 4
    $region21: #{tpu_custom_call.1} parent=1 // pred_fallthru
      _
    // Predicated region
    $region22: #{tpu_custom_call.1} parent=1 // pred_check
      _
    $region23: #{tpu_custom_call.1} parent=1 // pred_check_branch
      %73 = sbr.rel (0) target = $region25
    $region24: #{tpu_custom_call.1} parent=1 // pred_region
      _
    $region25: #{tpu_custom_call.1} parent=1 // pred_fallthru
      _
    // Predicated region
    $region26: #{tpu_custom_call.1} parent=1 // pred_check
      _
    $region27: #{tpu_custom_call.1} parent=1 // pred_check_branch
      %75 = sbr.rel (0) target = $region29
    $region28: #{tpu_custom_call.1} parent=1 // pred_region
      %s77 = ssub.s32 1024, 1024
      %78 = vsyncadd [#allocation9], %s77
      %s79 = sshll.u32 [#allocation10], 4
      %s80 = int_to_ptr.vmem [resolvable:$true] %s79
      %85 = dma.hbm_to_vmem [thread:$0]  %s6, 1024, %s80, [#allocation9], 64, 64, 4
    $region29: #{tpu_custom_call.1} parent=1 // pred_fallthru
      _
    // Predicated region
    $region30: #{tpu_custom_call.1} parent=1 // pred_check
      _
    $region31: #{tpu_custom_call.1} parent=1 // pred_check_branch
      %87 = sbr.rel (0) target = $region33
    $region32: #{tpu_custom_call.1} parent=1 // pred_region
      _
    $region33: #{tpu_custom_call.1} parent=1 // pred_fallthru
      _
    // Predicated region
    $region34: #{tpu_custom_call.1} parent=1 // pred_check
      _
    $region35: #{tpu_custom_call.1} parent=1 // pred_check_branch
      %89 = sbr.rel (0) target = $region37
    $region36: #{tpu_custom_call.1} parent=1 // pred_region
      _
    $region37: #{tpu_custom_call.1} parent=1 // pred_fallthru
      _
    // Predicated region
    $region38: #{tpu_custom_call.1} parent=1 // pred_check
      _
    $region39: #{tpu_custom_call.1} parent=1 // pred_check_branch
      %91 = sbr.rel (0) target = $region41
    $region40: #{tpu_custom_call.1} parent=1 // pred_region
      _
    $region41: #{tpu_custom_call.1} parent=1 // pred_fallthru
      _
    // Predicated region
    $region42: #{tpu_custom_call.1} parent=1 // pred_check
      _
    $region43: #{tpu_custom_call.1} parent=1 // pred_check_branch
      %93 = sbr.rel (0) target = $region45
    $region44: #{tpu_custom_call.1} parent=1 // pred_region
      %s95 = ssub.s32 1024, 1024
      %96 = vsyncadd [#allocation12], %s95
      %s97 = sshll.u32 [#allocation11], 4
      %s98 = int_to_ptr.vmem [resolvable:$true] %s97
      %103 = dma.hbm_to_vmem [thread:$0]  %s10, 1024, %s98, [#allocation12], 64, 64, 4
    $region45: #{tpu_custom_call.1} parent=1 // pred_fallthru
      _
    // Predicated region
    $region46: #{tpu_custom_call.1} parent=1 // pred_check
      _
    $region47: #{tpu_custom_call.1} parent=1 // pred_check_branch
      %105 = sbr.rel (0) target = $region49
    $region48: #{tpu_custom_call.1} parent=1 // pred_region
      _
    $region49: #{tpu_custom_call.1} parent=1 // pred_fallthru
      _
    // Predicated region
    $region50: #{tpu_custom_call.1} parent=1 // pred_check
      _
    $region51: #{tpu_custom_call.1} parent=1 // pred_check_branch
      %107 = sbr.rel (0) target = $region53
    $region52: #{tpu_custom_call.1} parent=1 // pred_region
      %108 = dma.done [#allocation3], 256
    $region53: #{tpu_custom_call.1} parent=1 // pred_fallthru
      _
    // Predicated region
    $region54: #{tpu_custom_call.1} parent=1 // pred_check
      _
    $region55: #{tpu_custom_call.1} parent=1 // pred_check_branch
      %110 = sbr.rel (0) target = $region57
    $region56: #{tpu_custom_call.1} parent=1 // pred_region
      %111 = dma.done [#allocation6], 256
    $region57: #{tpu_custom_call.1} parent=1 // pred_fallthru
      _
    // Predicated region
    $region58: #{tpu_custom_call.1} parent=1 // pred_check
      _
    $region59: #{tpu_custom_call.1} parent=1 // pred_check_branch
      %113 = sbr.rel (0) target = $region61
    $region60: #{tpu_custom_call.1} parent=1 // pred_region
      %114 = dma.done [#allocation6], 128
    $region61: #{tpu_custom_call.1} parent=1 // pred_fallthru
      _
    // Predicated region
    $region62: #{tpu_custom_call.1} parent=1 // pred_check
      _
    $region63: #{tpu_custom_call.1} parent=1 // pred_check_branch
      %116 = sbr.rel (0) target = $region65
    $region64: #{tpu_custom_call.1} parent=1 // pred_region
      %117 = dma.done [#allocation9], 2048
    $region65: #{tpu_custom_call.1} parent=1 // pred_fallthru
      _
    // Predicated region
    $region66: #{tpu_custom_call.1} parent=1 // pred_check
      _
    $region67: #{tpu_custom_call.1} parent=1 // pred_check_branch
      %119 = sbr.rel (0) target = $region69
    $region68: #{tpu_custom_call.1} parent=1 // pred_region
      %120 = dma.done [#allocation9], 1024
    $region69: #{tpu_custom_call.1} parent=1 // pred_fallthru
      _
    // Predicated region
    $region70: #{tpu_custom_call.1} parent=1 // pred_check
      _
    $region71: #{tpu_custom_call.1} parent=1 // pred_check_branch
      %122 = sbr.rel (0) target = $region73
    $region72: #{tpu_custom_call.1} parent=1 // pred_region
      %123 = dma.done [#allocation12], 1024
    $region73: #{tpu_custom_call.1} parent=1 // pred_fallthru
      _
    %v125 = vld [vmem:[#allocation2] sm:$0xff]
    %v126 = vld [vmem:[#allocation2 + $0x8] sm:$0xff]
    %v127 = vld [vmem:[#allocation5] sm:$0xff]
    %v128 = vld [vmem:[#allocation5 + $0x8] sm:$0xff]
    %v129 = vld [vmem:[#allocation7] sm:$0xf]
    %v130 = vld [vmem:[#allocation7 + $0x4] sm:$0xf]
    %v131 = vpack.c.bf16 %v128, %v127
    %v132 = vld [vmem:[%s3] sm:$0x1]
    %v134 = vlaneseq
    %v135 = vshrl.u32 %v134, 7
    %v136 = vsub.s32 0, %v135
    %v137 = vrot.slane %v132, %v136
    %v141 = vunpack.c.l.b16 %v129
    %v142 = vunpack.c.l.b16 %v130
    %v143 = vpack.c.b16 %v142, %v141
    %vm145 = vcmask 130048
    %v147 = vsel %vm145, %v131, 0
    %149 = vmatprep.subr.bf16.mxu0 0
    %150 = vmatpush1.bf16.msra.mxu0 %v143
    %151 = vmatprep.subr.bf16.mxu0 0
    %152 = vmatpush1.bf16.msra.mxu0 0
    %153 = vmatprep.subr.bf16.mxu0 0
    %154 = vmatpush1.bf16.msra.mxu0 0
    %155 = vmatprep.subr.bf16.mxu0 0
    %156 = vmatpush1.bf16.msra.mxu0 0
    %157 = vmatprep.subr.bf16.mxu0 0
    %158 = vmatpush1.bf16.msra.mxu0 0
    %159 = vmatprep.subr.bf16.mxu0 0
    %160 = vmatpush1.bf16.msra.mxu0 0
    %161 = vmatprep.subr.bf16.mxu0 0
    %162 = vmatpush1.bf16.msra.mxu0 0
    %163 = vmatprep.subr.bf16.mxu0 0
    %164 = vmatpush1.bf16.msra.mxu0 0
    %165 = vmatprep.subr.bf16.mxu0 0
    %166 = vmatpush1.bf16.msra.mxu0 0
    %167 = vmatprep.subr.bf16.mxu0 0
    %168 = vmatpush1.bf16.msra.mxu0 0
    %169 = vmatprep.subr.bf16.mxu0 0
    %170 = vmatpush1.bf16.msra.mxu0 0
    %171 = vmatprep.subr.bf16.mxu0 0
    %172 = vmatpush1.bf16.msra.mxu0 0
    %173 = vmatprep.subr.bf16.mxu0 0
    %174 = vmatpush1.bf16.msra.mxu0 0
    %175 = vmatprep.subr.bf16.mxu0 0
    %176 = vmatpush1.bf16.msra.mxu0 0
    %177 = vmatprep.subr.bf16.mxu0 0
    %178 = vmatpush1.bf16.msra.mxu0 0
    %179 = vmatprep.subr.bf16.mxu0 0
    %180 = vmatpush1.bf16.msra.mxu0 0
    %181 = vmatprep.mubr.bf16.mxu0 0
    %182 = vmatmul.mubr.bf16.gmra.mrb[0].mxu0 %v147
    %v183 = vpop.f32.mrb[0].mxu0
    %v184 = vadd.f32 %v137, %v183
    %v185 = vpop.f32.mrb[0].mxu0
    %v186 = vpop.f32.mrb[0].mxu0
    %v187 = vadd.f32 %v137, %v186
    %v188 = vpop.f32.mrb[0].mxu0
    %189 = vdwg.mxu0
    %v190 = vld [vmem:[#allocation8] sm:$0xf]
    %v191 = vld [vmem:[#allocation8 + $0x4] sm:$0xf]
    %v192 = vld [vmem:[#allocation8 + $0x8] sm:$0xf]
    %v193 = vld [vmem:[#allocation8 + $0xc] sm:$0xf]
    %v194 = vld [vmem:[#allocation8 + $0x10] sm:$0xf]
    %v195 = vld [vmem:[#allocation8 + $0x14] sm:$0xf]
    %v196 = vld [vmem:[#allocation8 + $0x18] sm:$0xf]
    %v197 = vld [vmem:[#allocation8 + $0x1c] sm:$0xf]
    %v198 = vld [vmem:[#allocation8 + $0x20] sm:$0xf]
    %v199 = vld [vmem:[#allocation8 + $0x24] sm:$0xf]
    %v200 = vld [vmem:[#allocation8 + $0x28] sm:$0xf]
    %v201 = vld [vmem:[#allocation8 + $0x2c] sm:$0xf]
    %v202 = vld [vmem:[#allocation8 + $0x30] sm:$0xf]
    %v203 = vld [vmem:[#allocation8 + $0x34] sm:$0xf]
    %v204 = vld [vmem:[#allocation8 + $0x38] sm:$0xf]
    %v205 = vld [vmem:[#allocation8 + $0x3c] sm:$0xf]
    %v206 = vld [vmem:[#allocation8 + $0x40] sm:$0xf]
    %v207 = vld [vmem:[#allocation8 + $0x44] sm:$0xf]
    %v208 = vld [vmem:[#allocation8 + $0x48] sm:$0xf]
    %v209 = vld [vmem:[#allocation8 + $0x4c] sm:$0xf]
    %v210 = vld [vmem:[#allocation8 + $0x50] sm:$0xf]
    %v211 = vld [vmem:[#allocation8 + $0x54] sm:$0xf]
    %v212 = vld [vmem:[#allocation8 + $0x58] sm:$0xf]
    %v213 = vld [vmem:[#allocation8 + $0x5c] sm:$0xf]
    %v214 = vld [vmem:[#allocation8 + $0x60] sm:$0xf]
    %v215 = vld [vmem:[#allocation8 + $0x64] sm:$0xf]
    %v216 = vld [vmem:[#allocation8 + $0x68] sm:$0xf]
    %v217 = vld [vmem:[#allocation8 + $0x6c] sm:$0xf]
    %v218 = vld [vmem:[#allocation8 + $0x70] sm:$0xf]
    %v219 = vld [vmem:[#allocation8 + $0x74] sm:$0xf]
    %v220 = vld [vmem:[#allocation8 + $0x78] sm:$0xf]
    %v221 = vld [vmem:[#allocation8 + $0x7c] sm:$0xf]
    %v222 = vpack.c.bf16 %v126, %v125
    %v223 = vpack.c.bf16 %v187, %v184
    %v224 = vld [vmem:[%s5] sm:$0x1]
    %v226 = vlaneseq
    %v227 = vshrl.u32 %v226, 7
    %v228 = vsub.s32 0, %v227
    %v229 = vrot.slane %v224, %v228
    %v263 = vunpack.c.l.b16 %v190
    %v264 = vunpack.c.l.b16 %v191
    %v265 = vunpack.c.l.b16 %v192
    %v266 = vunpack.c.l.b16 %v193
    %v267 = vunpack.c.l.b16 %v194
    %v268 = vunpack.c.l.b16 %v195
    %v269 = vunpack.c.l.b16 %v196
    %v270 = vunpack.c.l.b16 %v197
    %v271 = vunpack.c.l.b16 %v198
    %v272 = vunpack.c.l.b16 %v199
    %v273 = vunpack.c.l.b16 %v200
    %v274 = vunpack.c.l.b16 %v201
    %v275 = vunpack.c.l.b16 %v202
    %v276 = vunpack.c.l.b16 %v203
    %v277 = vunpack.c.l.b16 %v204
    %v278 = vunpack.c.l.b16 %v205
    %v279 = vunpack.c.l.b16 %v206
    %v280 = vunpack.c.l.b16 %v207
    %v281 = vunpack.c.l.b16 %v208
    %v282 = vunpack.c.l.b16 %v209
    %v283 = vunpack.c.l.b16 %v210
    %v284 = vunpack.c.l.b16 %v211
    %v285 = vunpack.c.l.b16 %v212
    %v286 = vunpack.c.l.b16 %v213
    %v287 = vunpack.c.l.b16 %v214
    %v288 = vunpack.c.l.b16 %v215
    %v289 = vunpack.c.l.b16 %v216
    %v290 = vunpack.c.l.b16 %v217
    %v291 = vunpack.c.l.b16 %v218
    %v292 = vunpack.c.l.b16 %v219
    %v293 = vunpack.c.l.b16 %v220
    %v294 = vunpack.c.l.b16 %v221
    %v295 = vpack.c.b16 %v264, %v263
    %v296 = vpack.c.b16 %v266, %v265
    %v297 = vpack.c.b16 %v268, %v267
    %v298 = vpack.c.b16 %v270, %v269
    %v299 = vpack.c.b16 %v272, %v271
    %v300 = vpack.c.b16 %v274, %v273
    %v301 = vpack.c.b16 %v276, %v275
    %v302 = vpack.c.b16 %v278, %v277
    %v303 = vpack.c.b16 %v280, %v279
    %v304 = vpack.c.b16 %v282, %v281
    %v305 = vpack.c.b16 %v284, %v283
    %v306 = vpack.c.b16 %v286, %v285
    %v307 = vpack.c.b16 %v288, %v287
    %v308 = vpack.c.b16 %v290, %v289
    %v309 = vpack.c.b16 %v292, %v291
    %v310 = vpack.c.b16 %v294, %v293
    %327 = vmatprep.subr.bf16.mxu0 0
    %328 = vmatpush1.bf16.msra.mxu0 %v295
    %329 = vmatprep.subr.bf16.mxu0 0
    %330 = vmatpush1.bf16.msra.mxu0 %v296
    %331 = vmatprep.subr.bf16.mxu0 0
    %332 = vmatpush1.bf16.msra.mxu0 %v297
    %333 = vmatprep.subr.bf16.mxu0 0
    %334 = vmatpush1.bf16.msra.mxu0 %v298
    %335 = vmatprep.subr.bf16.mxu0 0
    %336 = vmatpush1.bf16.msra.mxu0 %v299
    %337 = vmatprep.subr.bf16.mxu0 0
    %338 = vmatpush1.bf16.msra.mxu0 %v300
    %339 = vmatprep.subr.bf16.mxu0 0
    %340 = vmatpush1.bf16.msra.mxu0 %v301
    %341 = vmatprep.subr.bf16.mxu0 0
    %342 = vmatpush1.bf16.msra.mxu0 %v302
    %343 = vmatprep.subr.bf16.mxu0 0
    %344 = vmatpush1.bf16.msra.mxu0 %v303
    %345 = vmatprep.subr.bf16.mxu0 0
    %346 = vmatpush1.bf16.msra.mxu0 %v304
    %347 = vmatprep.subr.bf16.mxu0 0
    %348 = vmatpush1.bf16.msra.mxu0 %v305
    %349 = vmatprep.subr.bf16.mxu0 0
    %350 = vmatpush1.bf16.msra.mxu0 %v306
    %351 = vmatprep.subr.bf16.mxu0 0
    %352 = vmatpush1.bf16.msra.mxu0 %v307
    %353 = vmatprep.subr.bf16.mxu0 0
    %354 = vmatpush1.bf16.msra.mxu0 %v308
    %355 = vmatprep.subr.bf16.mxu0 0
    %356 = vmatpush1.bf16.msra.mxu0 %v309
    %357 = vmatprep.subr.bf16.mxu0 0
    %358 = vmatpush1.bf16.msra.mxu0 %v310
    %359 = vmatprep.mubr.bf16.mxu0 %v223
    %360 = vmatmul.mubr.bf16.gmra.mrb[0].mxu0 %v222
    %v361 = vpop.f32.mrb[0].mxu0
    %v362 = vadd.f32 %v229, %v361
    %v363 = vpop.f32.mrb[0].mxu0
    %v364 = vpop.f32.mrb[0].mxu0
    %v365 = vadd.f32 %v229, %v364
    %v366 = vpop.f32.mrb[0].mxu0
    %367 = vdwg.mxu0
    %v368 = vxor.u32 %v362, 2147483648
    %v369 = vxor.u32 %v365, 2147483648
    %v370 = vmul.f32 %v368, 1.442695
    %v371 = vpow.pop %v370
    %v372 = vmul.f32 %v369, 1.442695
    %v373 = vpow.pop %v372
    %v374 = vadd.f32 %v371, 1.0
    %v375 = vadd.f32 %v373, 1.0
    %v376 = vrcp.pop %v374
    %v377 = vmul.f32 1.0, %v376
    %v378 = vrcp.pop %v375
    %v379 = vmul.f32 1.0, %v378
    %v380 = vmul.f32 %v377, %v125
    %v381 = vmul.f32 %v379, %v126
    %v382 = vsub.f32 1.0, %v377
    %v383 = vsub.f32 1.0, %v379
    %v384 = vmul.f32 %v382, %v184
    %v385 = vmul.f32 %v383, %v187
    %v386 = vadd.f32 %v380, %v384
    %v387 = vadd.f32 %v381, %v385
    %v388 = vld [vmem:[#allocation10] sm:$0xf]
    %v389 = vld [vmem:[#allocation10 + $0x4] sm:$0xf]
    %v390 = vld [vmem:[#allocation10 + $0x8] sm:$0xf]
    %v391 = vld [vmem:[#allocation10 + $0xc] sm:$0xf]
    %v392 = vld [vmem:[#allocation10 + $0x10] sm:$0xf]
    %v393 = vld [vmem:[#allocation10 + $0x14] sm:$0xf]
    %v394 = vld [vmem:[#allocation10 + $0x18] sm:$0xf]
    %v395 = vld [vmem:[#allocation10 + $0x1c] sm:$0xf]
    %v396 = vld [vmem:[#allocation10 + $0x20] sm:$0xf]
    %v397 = vld [vmem:[#allocation10 + $0x24] sm:$0xf]
    %v398 = vld [vmem:[#allocation10 + $0x28] sm:$0xf]
    %v399 = vld [vmem:[#allocation10 + $0x2c] sm:$0xf]
    %v400 = vld [vmem:[#allocation10 + $0x30] sm:$0xf]
    %v401 = vld [vmem:[#allocation10 + $0x34] sm:$0xf]
    %v402 = vld [vmem:[#allocation10 + $0x38] sm:$0xf]
    %v403 = vld [vmem:[#allocation10 + $0x3c] sm:$0xf]
    %v404 = vpack.c.bf16 %v387, %v386
    %v405 = vld [vmem:[%s7] sm:$0x1]
    %v407 = vlaneseq
    %v408 = vshrl.u32 %v407, 7
    %v409 = vsub.s32 0, %v408
    %v410 = vrot.slane %v405, %v409
    %v428 = vunpack.c.l.b16 %v388
    %v429 = vunpack.c.l.b16 %v389
    %v430 = vunpack.c.l.b16 %v390
    %v431 = vunpack.c.l.b16 %v391
    %v432 = vunpack.c.l.b16 %v392
    %v433 = vunpack.c.l.b16 %v393
    %v434 = vunpack.c.l.b16 %v394
    %v435 = vunpack.c.l.b16 %v395
    %v436 = vunpack.c.l.b16 %v396
    %v437 = vunpack.c.l.b16 %v397
    %v438 = vunpack.c.l.b16 %v398
    %v439 = vunpack.c.l.b16 %v399
    %v440 = vunpack.c.l.b16 %v400
    %v441 = vunpack.c.l.b16 %v401
    %v442 = vunpack.c.l.b16 %v402
    %v443 = vunpack.c.l.b16 %v403
    %v444 = vpack.c.b16 %v429, %v428
    %v445 = vpack.c.b16 %v431, %v430
    %v446 = vpack.c.b16 %v433, %v432
    %v447 = vpack.c.b16 %v435, %v434
    %v448 = vpack.c.b16 %v437, %v436
    %v449 = vpack.c.b16 %v439, %v438
    %v450 = vpack.c.b16 %v441, %v440
    %v451 = vpack.c.b16 %v443, %v442
    %460 = vmatprep.subr.bf16.mxu0 0
    %461 = vmatpush1.bf16.msra.mxu0 %v444
    %462 = vmatprep.subr.bf16.mxu0 0
    %463 = vmatpush1.bf16.msra.mxu0 %v445
    %464 = vmatprep.subr.bf16.mxu0 0
    %465 = vmatpush1.bf16.msra.mxu0 %v446
    %466 = vmatprep.subr.bf16.mxu0 0
    %467 = vmatpush1.bf16.msra.mxu0 %v447
    %468 = vmatprep.subr.bf16.mxu0 0
    %469 = vmatpush1.bf16.msra.mxu0 %v448
    %470 = vmatprep.subr.bf16.mxu0 0
    %471 = vmatpush1.bf16.msra.mxu0 %v449
    %472 = vmatprep.subr.bf16.mxu0 0
    %473 = vmatpush1.bf16.msra.mxu0 %v450
    %474 = vmatprep.subr.bf16.mxu0 0
    %475 = vmatpush1.bf16.msra.mxu0 %v451
    %476 = vmatprep.subr.bf16.mxu0 0
    %477 = vmatpush1.bf16.msra.mxu0 0
    %478 = vmatprep.subr.bf16.mxu0 0
    %479 = vmatpush1.bf16.msra.mxu0 0
    %480 = vmatprep.subr.bf16.mxu0 0
    %481 = vmatpush1.bf16.msra.mxu0 0
    %482 = vmatprep.subr.bf16.mxu0 0
    %483 = vmatpush1.bf16.msra.mxu0 0
    %484 = vmatprep.subr.bf16.mxu0 0
    %485 = vmatpush1.bf16.msra.mxu0 0
    %486 = vmatprep.subr.bf16.mxu0 0
    %487 = vmatpush1.bf16.msra.mxu0 0
    %488 = vmatprep.subr.bf16.mxu0 0
    %489 = vmatpush1.bf16.msra.mxu0 0
    %490 = vmatprep.subr.bf16.mxu0 0
    %491 = vmatpush1.bf16.msra.mxu0 0
    %492 = vmatprep.mubr.bf16.mxu0 0
    %493 = vmatmul.mubr.bf16.gmra.mrb[0].mxu0 %v404
    %v494 = vpop.f32.mrb[0].mxu0
    %v495 = vadd.f32 %v410, %v494
    %v496 = vpop.f32.mrb[0].mxu0
    %v497 = vpop.f32.mrb[0].mxu0
    %v498 = vadd.f32 %v410, %v497
    %v499 = vpop.f32.mrb[0].mxu0
    %500 = vdwg.mxu0
    %v501 = vxor.u32 %v495, 2147483648
    %v502 = vxor.u32 %v498, 2147483648
    %v503 = vmul.f32 %v501, 1.442695
    %v504 = vpow.pop %v503
    %v505 = vmul.f32 %v502, 1.442695
    %v506 = vpow.pop %v505
    %v507 = vadd.f32 %v504, 1.0
    %v508 = vadd.f32 %v506, 1.0
    %v509 = vrcp.pop %v507
    %v510 = vmul.f32 1.0, %v509
    %v511 = vrcp.pop %v508
    %v512 = vmul.f32 1.0, %v511
    %v513 = vmul.f32 %v495, %v510
    %v514 = vmul.f32 %v498, %v512
    %v515 = vld [vmem:[%s8] sm:$0x1]
    %v516 = vld [vmem:[%s9] sm:$0x1]
    %517 = vadd.xlane.f32.xlu0 %v513
    %v518 = vpop.xlane.xlu0 %517
    %519 = vadd.xlane.f32.xlu0 %v514
    %v520 = vpop.xlane.xlu0 %519
    %v521 = vrcp.pop 128.0
    %v522 = vmul.f32 %v518, %v521
    %v523 = vmul.f32 %v520, %v521
    %v524 = vsub.f32 %v513, %v522
    %v525 = vsub.f32 %v514, %v523
    %v526 = vmul.f32 %v524, %v524
    %v527 = vmul.f32 %v525, %v525
    %528 = vadd.xlane.f32.xlu0 %v526
    %v529 = vpop.xlane.xlu0 %528
    %530 = vadd.xlane.f32.xlu0 %v527
    %v531 = vpop.xlane.xlu0 %530
    %v532 = vmul.f32 %v529, %v521
    %v533 = vmul.f32 %v531, %v521
    %v534 = vadd.f32 %v532, 1e-05
    %v535 = vadd.f32 %v533, 1e-05
    %v536 = vrsqrt.pop %v534
    %v537 = vrsqrt.pop %v535
    %v538 = vmul.f32 %v524, %v536
    %v539 = vmul.f32 %v525, %v537
    %v541 = vlaneseq
    %v542 = vshrl.u32 %v541, 7
    %v543 = vsub.s32 0, %v542
    %v544 = vrot.slane %v515, %v543
    %v546 = vmul.f32 %v538, %v544
    %v547 = vmul.f32 %v539, %v544
    %v549 = vlaneseq
    %v550 = vshrl.u32 %v549, 7
    %v551 = vsub.s32 0, %v550
    %v552 = vrot.slane %v516, %v551
    %v554 = vadd.f32 %v546, %v552
    %v555 = vadd.f32 %v547, %v552
    %v556 = vld [vmem:[#allocation11] sm:$0xf]
    %v557 = vld [vmem:[#allocation11 + $0x4] sm:$0xf]
    %v558 = vld [vmem:[#allocation11 + $0x8] sm:$0xf]
    %v559 = vld [vmem:[#allocation11 + $0xc] sm:$0xf]
    %v560 = vld [vmem:[#allocation11 + $0x10] sm:$0xf]
    %v561 = vld [vmem:[#allocation11 + $0x14] sm:$0xf]
    %v562 = vld [vmem:[#allocation11 + $0x18] sm:$0xf]
    %v563 = vld [vmem:[#allocation11 + $0x1c] sm:$0xf]
    %v564 = vld [vmem:[#allocation11 + $0x20] sm:$0xf]
    %v565 = vld [vmem:[#allocation11 + $0x24] sm:$0xf]
    %v566 = vld [vmem:[#allocation11 + $0x28] sm:$0xf]
    %v567 = vld [vmem:[#allocation11 + $0x2c] sm:$0xf]
    %v568 = vld [vmem:[#allocation11 + $0x30] sm:$0xf]
    %v569 = vld [vmem:[#allocation11 + $0x34] sm:$0xf]
    %v570 = vld [vmem:[#allocation11 + $0x38] sm:$0xf]
    %v571 = vld [vmem:[#allocation11 + $0x3c] sm:$0xf]
    %v572 = vpack.c.bf16 %v555, %v554
    %v573 = vld [vmem:[%s11] sm:$0x1]
    %v575 = vlaneseq
    %v576 = vshrl.u32 %v575, 7
    %v577 = vsub.s32 0, %v576
    %v578 = vrot.slane %v573, %v577
    %v596 = vunpack.c.l.b16 %v556
    %v597 = vunpack.c.l.b16 %v557
    %v598 = vunpack.c.l.b16 %v558
    %v599 = vunpack.c.l.b16 %v559
    %v600 = vunpack.c.l.b16 %v560
    %v601 = vunpack.c.l.b16 %v561
    %v602 = vunpack.c.l.b16 %v562
    %v603 = vunpack.c.l.b16 %v563
    %v604 = vunpack.c.l.b16 %v564
    %v605 = vunpack.c.l.b16 %v565
    %v606 = vunpack.c.l.b16 %v566
    %v607 = vunpack.c.l.b16 %v567
    %v608 = vunpack.c.l.b16 %v568
    %v609 = vunpack.c.l.b16 %v569
    %v610 = vunpack.c.l.b16 %v570
    %v611 = vunpack.c.l.b16 %v571
    %v612 = vpack.c.b16 %v597, %v596
    %v613 = vpack.c.b16 %v599, %v598
    %v614 = vpack.c.b16 %v601, %v600
    %v615 = vpack.c.b16 %v603, %v602
    %v616 = vpack.c.b16 %v605, %v604
    %v617 = vpack.c.b16 %v607, %v606
    %v618 = vpack.c.b16 %v609, %v608
    %v619 = vpack.c.b16 %v611, %v610
    %628 = vmatprep.subr.bf16.mxu0 0
    %629 = vmatpush1.bf16.msra.mxu0 %v612
    %630 = vmatprep.subr.bf16.mxu0 0
    %631 = vmatpush1.bf16.msra.mxu0 %v613
    %632 = vmatprep.subr.bf16.mxu0 0
    %633 = vmatpush1.bf16.msra.mxu0 %v614
    %634 = vmatprep.subr.bf16.mxu0 0
    %635 = vmatpush1.bf16.msra.mxu0 %v615
    %636 = vmatprep.subr.bf16.mxu0 0
    %637 = vmatpush1.bf16.msra.mxu0 %v616
    %638 = vmatprep.subr.bf16.mxu0 0
    %639 = vmatpush1.bf16.msra.mxu0 %v617
    %640 = vmatprep.subr.bf16.mxu0 0
    %641 = vmatpush1.bf16.msra.mxu0 %v618
    %642 = vmatprep.subr.bf16.mxu0 0
    %643 = vmatpush1.bf16.msra.mxu0 %v619
    %644 = vmatprep.subr.bf16.mxu0 0
    %645 = vmatpush1.bf16.msra.mxu0 0
    %646 = vmatprep.subr.bf16.mxu0 0
    %647 = vmatpush1.bf16.msra.mxu0 0
    %648 = vmatprep.subr.bf16.mxu0 0
    %649 = vmatpush1.bf16.msra.mxu0 0
    %650 = vmatprep.subr.bf16.mxu0 0
    %651 = vmatpush1.bf16.msra.mxu0 0
    %652 = vmatprep.subr.bf16.mxu0 0
    %653 = vmatpush1.bf16.msra.mxu0 0
    %654 = vmatprep.subr.bf16.mxu0 0
    %655 = vmatpush1.bf16.msra.mxu0 0
    %656 = vmatprep.subr.bf16.mxu0 0
    %657 = vmatpush1.bf16.msra.mxu0 0
    %658 = vmatprep.subr.bf16.mxu0 0
    %659 = vmatpush1.bf16.msra.mxu0 0
    %660 = vmatprep.mubr.bf16.mxu0 0
    %661 = vmatmul.mubr.bf16.gmra.mrb[0].mxu0 %v572
    %v662 = vpop.f32.mrb[0].mxu0
    %v663 = vadd.f32 %v578, %v662
    %v664 = vpop.f32.mrb[0].mxu0
    %v665 = vpop.f32.mrb[0].mxu0
    %v666 = vadd.f32 %v578, %v665
    %v667 = vpop.f32.mrb[0].mxu0
    %668 = vdwg.mxu0
    %669 = vst [vmem:[#allocation13] sm:$0xff] %v663
    %670 = vst [vmem:[#allocation13 + $0x8] sm:$0xff] %v666
    // Predicated region
    $region74: #{tpu_custom_call.1} parent=1 // pred_check
      _
    $region75: #{tpu_custom_call.1} parent=1 // pred_check_branch
      %672 = sbr.rel (0) target = $region77
    $region76: #{tpu_custom_call.1} parent=1 // pred_region
      %s674 = ssub.s32 256, 256
      %675 = vsyncadd [#allocation4], %s674
      %s676 = sshll.u32 [#allocation13], 4
      %s677 = int_to_ptr.vmem [resolvable:$true] %s676
      %682 = dma.vmem_to_hbm [thread:$0]  %s677, 256, %s12, [#allocation4], 128, 128, 8
    $region77: #{tpu_custom_call.1} parent=1 // pred_fallthru
      _
    // Predicated region
    $region78: #{tpu_custom_call.1} parent=1 // pred_check
      _
    $region79: #{tpu_custom_call.1} parent=1 // pred_check_branch
      %684 = sbr.rel (0) target = $region81
    $region80: #{tpu_custom_call.1} parent=1 // pred_region
      %685 = dma.done [#allocation4], 256
    $region81: #{tpu_custom_call.1} parent=1 // pred_fallthru
      _
    %686 = vsyncpa [#allocation3], 1
    %687 = vsyncpa [#allocation6], 1
    %688 = vsyncpa [#allocation9], 1
    %689 = vsyncpa [#allocation12], 1
    %690 = vsyncpa [#allocation4], 1

</llo_original>
